<compile_context>
chip_gen: v7x
topology: tpu7x:2x2x1
jax: 0.10.0
libtpu: 0.0.40
codegen_flags: <defaults>
</compile_context>

<pallas_src>
import functools
import math

import jax
import jax.numpy as jnp
from jax.experimental import pallas as pl
from jax.experimental.pallas import tpu as pltpu


def _round_up(x, mult):
    return ((x + mult - 1) // mult) * mult


def _gelu(x):
    # TODO(synk): PyTorch nn.GELU() defaults to the exact erf form; the tanh
    # approximation is used here (EUP-friendly on all TPU generations).
    return jax.nn.gelu(x, approximate=True)


def _ffse3_degree_kernel(x_ref, w_in_ref, scale_ref, w_out_ref, o_ref, *, m, eps):
    """Fused project_in -> NormSE3 -> project_out for one degree, one row tile.

    x_ref:     (m, Din, TR)  rows on the 128-lane axis, channels on sublanes
    w_in_ref:  (Dh,  Din)    project_in weight, stored transposed
    scale_ref: (Dh,  1)      NormSE3 per-channel scale
    w_out_ref: (Dout, Dh)    project_out weight, stored transposed
    o_ref:     (m, Dout, TR)
    """
    # project_in for each of the m spherical components; accumulate |h|^2 over m.
    h = []
    norm_sq = None
    for j in range(m):  # m <= 7: static unroll
        hj = jnp.dot(w_in_ref[...], x_ref[j],
                     preferred_element_type=jnp.float32)          # (Dh, TR)
        h.append(hj)
        sq = hj * hj
        norm_sq = sq if norm_sq is None else norm_sq + sq

    # NormSE3: out = GELU(norm * scale) * (h / norm), norm clamped at eps.
    norm = jnp.maximum(jnp.sqrt(norm_sq), eps)                    # (Dh, TR)
    gain = _gelu(norm * scale_ref[...]) / norm                    # (Dh, TR)

    # project_out for each component (lane-dense stores: last dim is TR).
    for j in range(m):
        yj = jnp.dot(w_out_ref[...], gain * h[j],
                     preferred_element_type=jnp.float32)          # (Dout, TR)
        o_ref[j] = yj.astype(o_ref.dtype)


def _ffse3_degree_forward(x, w_in_t, scale, w_out_t, *, tile_rows=1024, eps=1e-12):
    """x: (B, N, Din, m) -> (B, N, Dout, m) for a single degree."""
    b, n, din, m = x.shape
    dh = w_in_t.shape[0]
    dout = w_out_t.shape[0]
    rows = b * n

    # Transposed lane-dense layout: (m, Din, rows).  Pad rows so every grid
    # block is a full tile with the lane dim a multiple of 128 (padded rows are
    # zeros -> zero output; sliced off below).
    xt = jnp.transpose(x.reshape(rows, din, m), (2, 1, 0))
    tr = min(tile_rows, _round_up(rows, 128))
    rows_p = _round_up(rows, tr)
    if rows_p != rows:
        xt = jnp.pad(xt, ((0, 0), (0, 0), (0, rows_p - rows)))

    out = pl.pallas_call(
        functools.partial(_ffse3_degree_kernel, m=m, eps=eps),
        out_shape=jax.ShapeDtypeStruct((m, dout, rows_p), x.dtype),
        grid_spec=pl.GridSpec(
            grid=(rows_p // tr,),
            in_specs=[
                # activations: tiled along rows (auto double-buffered pipeline)
                pl.BlockSpec((m, din, tr), lambda i: (0, 0, i)),
                # weights / scale: VMEM-resident across the whole grid
                pl.BlockSpec((dh, din), lambda i: (0, 0)),
                pl.BlockSpec((dh, 1), lambda i: (0, 0)),
                pl.BlockSpec((dout, dh), lambda i: (0, 0)),
            ],
            out_specs=pl.BlockSpec((m, dout, tr), lambda i: (0, 0, i)),
        ),
        compiler_params=pltpu.CompilerParams(
            dimension_semantics=("parallel",),     # row tiles are independent
            vmem_limit_bytes=32 * 1024 * 1024,     # safe on v5e/v6e/v7x
        ),
    )(xt, w_in_t, scale, w_out_t)

    out = out[:, :, :rows]
    return jnp.transpose(out, (2, 1, 0)).reshape(b, n, dout, m)


def ffse3_forward(features, params, *, tile_rows=1024):
    """features: dict degree -> (B, N, dim, 2*degree+1). Returns same structure."""
    out = {}
    for degree, x in features.items():
        p = params[degree]
        out[degree] = _ffse3_degree_forward(
            x, p["w_in_t"], p["scale"], p["w_out_t"], tile_rows=tile_rows)
    return out


def init_ffse3_params(key, fiber_in, fiber_out, mult=4):
    """Mirror FFSE3.__init__ with gated_scale=False.

    LinearSE3 weight ~ N(0, 1/dim_in); NormSE3 scale inits to ones in PyTorch
    (a small perturbation is added here only so the numerical check exercises
    the scale multiply).
    """
    # TODO(synk): gated_scale=True (scale = norm @ w_gate) path not implemented;
    # only the default gated_scale=False branch is covered.
    params = {}
    for degree, din in fiber_in.items():
        dout = fiber_out[degree]
        dh = din * mult
        key, k1, k2, k3 = jax.random.split(key, 4)
        w_in = jax.random.normal(k1, (din, dh), jnp.float32) / math.sqrt(din)
        w_out = jax.random.normal(k2, (dh, dout), jnp.float32) / math.sqrt(dh)
        scale = 1.0 + 0.1 * jax.random.normal(k3, (dh, 1), jnp.float32)
        params[degree] = dict(
            w_in_t=jnp.transpose(w_in),    # (Dh, Din)  kernel-ready transposed
            scale=scale,                   # (Dh, 1)
            w_out_t=jnp.transpose(w_out),  # (Dout, Dh)
        )
    return params


def ffse3_reference(features, params, eps=1e-12):
    """Pure-JAX reference matching the PyTorch forward (gated_scale=False)."""
    hi = jax.lax.Precision.HIGHEST
    out = {}
    for degree, x in features.items():
        p = params[degree]
        w_in = jnp.transpose(p["w_in_t"])    # (Din, Dh)
        w_out = jnp.transpose(p["w_out_t"])  # (Dh, Dout)
        scale = p["scale"][:, 0]             # (Dh,)
        h = jnp.einsum("bndm,de->bnem", x, w_in, precision=hi)
        norm = jnp.maximum(jnp.sqrt(jnp.sum(h * h, axis=-1, keepdims=True)), eps)
        phase = h / norm
        gate = _gelu(norm[..., 0] * scale)[..., None]
        hp = gate * phase
        out[degree] = jnp.einsum("bndm,de->bnem", hp, w_out, precision=hi)
    return out


if __name__ == "__main__":
    key = jax.random.PRNGKey(0)
    kx0, kx1, kp = jax.random.split(key, 3)

    # Small shapes consistent with FFSE3: batch=2, nodes(seq)=8,
    # fiber_in = fiber_out = {degree 0: 8 channels, degree 1: 4 channels}, mult=4.
    batch, nodes = 2, 8
    fiber_in = {0: 8, 1: 4}
    fiber_out = dict(fiber_in)

    features = {
        0: jax.random.normal(kx0, (batch, nodes, fiber_in[0], 1), jnp.float32),
        1: jax.random.normal(kx1, (batch, nodes, fiber_in[1], 3), jnp.float32),
    }

    params = init_ffse3_params(kp, fiber_in, fiber_out, mult=4)

    out = ffse3_forward(features, params)
    out = jax.block_until_ready(out)

    ref = ffse3_reference(features, params)
    for degree in features:
        m = 2 * degree + 1
        assert out[degree].shape == (batch, nodes, fiber_out[degree], m)
        assert jnp.allclose(out[degree], ref[degree], atol=1e-3, rtol=1e-3), (
            f"mismatch vs reference for degree {degree}")

    print("KERNEL_OK")
</pallas_src>

<mosaic_0001>
module attributes {stable_mosaic.version = 11 : i64} {
  func.func @_ffse3_degree_kernel(%arg0: i32, %arg1: memref<1x8x128xf32, #tpu.memory_space<vmem>>, %arg2: memref<32x8xf32, #tpu.memory_space<vmem>>, %arg3: memref<32x1xf32, #tpu.memory_space<vmem>>, %arg4: memref<8x32xf32, #tpu.memory_space<vmem>>, %arg5: memref<1x8x128xf32, #tpu.memory_space<vmem>>) attributes {dimension_semantics = [#tpu.dimension_semantics<parallel>], iteration_bounds = array<i64: 1>, scalar_prefetch = 0 : i64, scratch_operands = 0 : i64, tpu.core_type = #tpu.core_type<tc>, window_params = [{transform_indices = @transform_0, window_bounds = array<i64: 1, 8, 128>}, {pipeline_mode = #tpu.pipeline_mode<synchronous>, transform_indices = @transform_1, window_bounds = array<i64: 32, 8>}, {pipeline_mode = #tpu.pipeline_mode<synchronous>, transform_indices = @transform_2, window_bounds = array<i64: 32, 1>}, {pipeline_mode = #tpu.pipeline_mode<synchronous>, transform_indices = @transform_3, window_bounds = array<i64: 8, 32>}, {transform_indices = @transform_4, window_bounds = array<i64: 1, 8, 128>}]} {
    %c0 = arith.constant 0 : index
    %c0_0 = arith.constant 0 : index
    %0 = vector.load %arg2[%c0, %c0_0] : memref<32x8xf32, #tpu.memory_space<vmem>>, vector<32x8xf32>
    %c0_1 = arith.constant 0 : index
    %c0_2 = arith.constant 0 : index
    %c0_3 = arith.constant 0 : index
    %1 = vector.load %arg1[%c0_1, %c0_2, %c0_3] : memref<1x8x128xf32, #tpu.memory_space<vmem>>, vector<1x8x128xf32>
    %2 = vector.shape_cast %1 : vector<1x8x128xf32> to vector<8x128xf32>
    %cst = arith.constant dense<0.000000e+00> : vector<32x128xf32>
    %3 = tpu.matmul %0, %2, %cst {dimension_numbers = #tpu.dot_dimension_numbers<[1], [0], [0], [1], [0, 0, 1, 1], [], []>} : vector<32x8xf32>, vector<8x128xf32>, vector<32x128xf32> -> vector<32x128xf32>
    %4 = arith.mulf %3, %3 : vector<32x128xf32>
    %5 = math.sqrt %4 : vector<32x128xf32>
    %cst_4 = arith.constant 9.99999996E-13 : f32
    %6 = vector.broadcast %cst_4 : f32 to vector<32x128xf32>
    %7 = arith.maximumf %5, %6 : vector<32x128xf32>
    %c0_5 = arith.constant 0 : index
    %c0_6 = arith.constant 0 : index
    %8 = vector.load %arg3[%c0_5, %c0_6] : memref<32x1xf32, #tpu.memory_space<vmem>>, vector<32x1xf32>
    %9 = vector.broadcast %8 : vector<32x1xf32> to vector<32x128xf32>
    %10 = arith.mulf %7, %9 : vector<32x128xf32>
    %11 = arith.mulf %10, %10 : vector<32x128xf32>
    %12 = arith.mulf %10, %11 : vector<32x128xf32>
    %cst_7 = arith.constant 4.471500e-02 : f32
    %13 = vector.broadcast %cst_7 : f32 to vector<32x128xf32>
    %14 = arith.mulf %13, %12 : vector<32x128xf32>
    %15 = arith.addf %10, %14 : vector<32x128xf32>
    %cst_8 = arith.constant 0.797884583 : f32
    %16 = vector.broadcast %cst_8 : f32 to vector<32x128xf32>
    %17 = arith.mulf %16, %15 : vector<32x128xf32>
    %18 = math.tanh %17 : vector<32x128xf32>
    %cst_9 = arith.constant 1.000000e+00 : f32
    %19 = vector.broadcast %cst_9 : f32 to vector<32x128xf32>
    %20 = arith.addf %19, %18 : vector<32x128xf32>
    %cst_10 = arith.constant 5.000000e-01 : f32
    %21 = vector.broadcast %cst_10 : f32 to vector<32x128xf32>
    %22 = arith.mulf %21, %20 : vector<32x128xf32>
    %23 = arith.mulf %10, %22 : vector<32x128xf32>
    %24 = arith.divf %23, %7 : vector<32x128xf32>
    %c0_11 = arith.constant 0 : index
    %c0_12 = arith.constant 0 : index
    %25 = vector.load %arg4[%c0_11, %c0_12] : memref<8x32xf32, #tpu.memory_space<vmem>>, vector<8x32xf32>
    %26 = arith.mulf %24, %3 : vector<32x128xf32>
    %cst_13 = arith.constant dense<0.000000e+00> : vector<8x128xf32>
    %27 = tpu.matmul %25, %26, %cst_13 {dimension_numbers = #tpu.dot_dimension_numbers<[1], [0], [0], [1], [0, 0, 1, 1], [], []>} : vector<8x32xf32>, vector<32x128xf32>, vector<8x128xf32> -> vector<8x128xf32>
    %c0_14 = arith.constant 0 : index
    %c0_15 = arith.constant 0 : index
    %c0_16 = arith.constant 0 : index
    %28 = vector.load %arg5[%c0_14, %c0_15, %c0_16] : memref<1x8x128xf32, #tpu.memory_space<vmem>>, vector<1x8x128xf32>
    %29 = vector.shape_cast %28 : vector<1x8x128xf32> to vector<8x128xf32>
    %30 = vector.shape_cast %27 : vector<8x128xf32> to vector<1x8x128xf32>
    tpu.vector_store %arg5[%c0_14, %c0_15, %c0_16], %30 {strides = array<i32>} : memref<1x8x128xf32, #tpu.memory_space<vmem>>, vector<1x8x128xf32>,
    return
  }
  func.func @transform_0(%arg0: i32) -> (i32, i32, i32) {
    %c0_i32 = arith.constant 0 : i32
    %c0_i32_0 = arith.constant 0 : i32
    %c0_i32_1 = arith.constant 0 : i32
    return %c0_i32, %c0_i32_0, %arg0 : i32, i32, i32
  }
  func.func @transform_1(%arg0: i32) -> (i32, i32) {
    %c0_i32 = arith.constant 0 : i32
    %c0_i32_0 = arith.constant 0 : i32
    %c0_i32_1 = arith.constant 0 : i32
    return %c0_i32, %c0_i32_0 : i32, i32
  }
  func.func @transform_2(%arg0: i32) -> (i32, i32) {
    %c0_i32 = arith.constant 0 : i32
    %c0_i32_0 = arith.constant 0 : i32
    %c0_i32_1 = arith.constant 0 : i32
    return %c0_i32, %c0_i32_0 : i32, i32
  }
  func.func @transform_3(%arg0: i32) -> (i32, i32) {
    %c0_i32 = arith.constant 0 : i32
    %c0_i32_0 = arith.constant 0 : i32
    %c0_i32_1 = arith.constant 0 : i32
    return %c0_i32, %c0_i32_0 : i32, i32
  }
  func.func @transform_4(%arg0: i32) -> (i32, i32, i32) {
    %c0_i32 = arith.constant 0 : i32
    %c0_i32_0 = arith.constant 0 : i32
    %c0_i32_1 = arith.constant 0 : i32
    return %c0_i32, %c0_i32_0, %arg0 : i32, i32, i32
  }
}

</mosaic_0001>

<llo_original>
// kernel: tpu_custom_call.1
$region0: #{tpu_custom_call.1}
  #allocation0 [shape = 'u32[]', space=smem, size = 0x4, offset = 0x4, fixed_abs, tag = 'smem constant byte address 0x4 - core index']
  #allocation1 [shape = 'u32[144,128]{1,0:T(1,128)}', space=vmem, size = 0x12000, scoped, tag = 'internal scratch']
  %s0 = inlined_call_operand.vmem [shape: f32[1,8,128], index: 0, kind: input, shape index: {}]
  %s1 = inlined_call_operand.vmem [shape: f32[32,8], index: 1, kind: input, shape index: {}]
  %s2 = inlined_call_operand.vmem [shape: f32[32,1], index: 2, kind: input, shape index: {}]
  %s3 = inlined_call_operand.vmem [shape: f32[8,32], index: 3, kind: input, shape index: {}]
  %s4 = inlined_call_operand.hbm [shape: f32[1,8,128], index: 4, kind: output, shape index: {}]
  %s5 = sld [smem:[#allocation0]]
  $region26: #{tpu_custom_call.1} parent=0
    _
  %s7 = ssub.s32 1, %s5
  %s8 = scalar_select 0, %s7, %s5
  $region1: #{tpu_custom_call.1} parent=0
    #allocation2 [shape = 'u8[4096]{0}', space=vmem, size = 0x1000, scoped, tag = 'output window, operand 0, single buffered']
    #allocation3 [shape = 's32[1]{0}', space=sflag, size = 0x4, scoped, tag = 'scoped memory for tpu_custom_call.1']
    %9 = vsyncpa [#allocation3], 0
    // Predicated region
    $region2: #{tpu_custom_call.1} parent=1 // pred_check
      _
    $region3: #{tpu_custom_call.1} parent=1 // pred_check_branch
      %11 = sbr.rel (0) target = $region5
    $region4: #{tpu_custom_call.1} parent=1 // pred_region
      _
    $region5: #{tpu_custom_call.1} parent=1 // pred_fallthru
      _
    // Predicated region
    $region6: #{tpu_custom_call.1} parent=1 // pred_check
      _
    $region7: #{tpu_custom_call.1} parent=1 // pred_check_branch
      %13 = sbr.rel (0) target = $region9
    $region8: #{tpu_custom_call.1} parent=1 // pred_region
      _
    $region9: #{tpu_custom_call.1} parent=1 // pred_fallthru
      _
    // Predicated region
    $region10: #{tpu_custom_call.1} parent=1 // pred_check
      _
    $region11: #{tpu_custom_call.1} parent=1 // pred_check_branch
      %15 = sbr.rel (0) target = $region13
    $region12: #{tpu_custom_call.1} parent=1 // pred_region
      _
    $region13: #{tpu_custom_call.1} parent=1 // pred_fallthru
      _
    // Predicated region
    $region14: #{tpu_custom_call.1} parent=1 // pred_check
      _
    $region15: #{tpu_custom_call.1} parent=1 // pred_check_branch
      %17 = sbr.rel (0) target = $region17
    $region16: #{tpu_custom_call.1} parent=1 // pred_region
      _
    $region17: #{tpu_custom_call.1} parent=1 // pred_fallthru
      _
    %v18 = vld [vmem:[%s1] sm:$0xff]
    %v19 = vld [vmem:[%s1 + $0x8] sm:$0xff]
    %v20 = vld [vmem:[%s1 + $0x10] sm:$0xff]
    %v21 = vld [vmem:[%s1 + $0x18] sm:$0xff]
    %v22 = vld [vmem:[%s0] sm:$0xff]
    %vm23 = vcmask 64512
    %v25 = vsel %vm23, %v18, 0
    %v28 = vsel %vm23, %v19, 0
    %v31 = vsel %vm23, %v20, 0
    %v34 = vsel %vm23, %v21, 0
    %36 = vmatprep.subr.mxu0 0.0
    %37 = vmatpush1.msra.mxu0 %v22
    %38 = vmatprep.subr.mxu0 0.0
    %39 = vmatpush1.msra.mxu0 0.0
    %40 = vmatprep.subr.mxu0 0.0
    %41 = vmatpush1.msra.mxu0 0.0
    %42 = vmatprep.subr.mxu0 0.0
    %43 = vmatpush1.msra.mxu0 0.0
    %44 = vmatprep.subr.mxu0 0.0
    %45 = vmatpush1.msra.mxu0 0.0
    %46 = vmatprep.subr.mxu0 0.0
    %47 = vmatpush1.msra.mxu0 0.0
    %48 = vmatprep.subr.mxu0 0.0
    %49 = vmatpush1.msra.mxu0 0.0
    %50 = vmatprep.subr.mxu0 0.0
    %51 = vmatpush1.msra.mxu0 0.0
    %52 = vmatprep.subr.mxu0 0.0
    %53 = vmatpush1.msra.mxu0 0.0
    %54 = vmatprep.subr.mxu0 0.0
    %55 = vmatpush1.msra.mxu0 0.0
    %56 = vmatprep.subr.mxu0 0.0
    %57 = vmatpush1.msra.mxu0 0.0
    %58 = vmatprep.subr.mxu0 0.0
    %59 = vmatpush1.msra.mxu0 0.0
    %60 = vmatprep.subr.mxu0 0.0
    %61 = vmatpush1.msra.mxu0 0.0
    %62 = vmatprep.subr.mxu0 0.0
    %63 = vmatpush1.msra.mxu0 0.0
    %64 = vmatprep.subr.mxu0 0.0
    %65 = vmatpush1.msra.mxu0 0.0
    %66 = vmatprep.subr.mxu0 0.0
    %67 = vmatpush1.msra.mxu0 0.0
    %68 = vmatprep.subr.mxu0 0.0
    %69 = vmatpush1.msra.mxu0 0.0
    %70 = vmatprep.subr.mxu0 0.0
    %71 = vmatpush1.msra.mxu0 0.0
    %72 = vmatprep.subr.mxu0 0.0
    %73 = vmatpush1.msra.mxu0 0.0
    %74 = vmatprep.subr.mxu0 0.0
    %75 = vmatpush1.msra.mxu0 0.0
    %76 = vmatprep.subr.mxu0 0.0
    %77 = vmatpush1.msra.mxu0 0.0
    %78 = vmatprep.subr.mxu0 0.0
    %79 = vmatpush1.msra.mxu0 0.0
    %80 = vmatprep.subr.mxu0 0.0
    %81 = vmatpush1.msra.mxu0 0.0
    %82 = vmatprep.subr.mxu0 0.0
    %83 = vmatpush1.msra.mxu0 0.0
    %84 = vmatprep.subr.mxu0 0.0
    %85 = vmatpush1.msra.mxu0 0.0
    %86 = vmatprep.subr.mxu0 0.0
    %87 = vmatpush1.msra.mxu0 0.0
    %88 = vmatprep.subr.mxu0 0.0
    %89 = vmatpush1.msra.mxu0 0.0
    %90 = vmatprep.subr.mxu0 0.0
    %91 = vmatpush1.msra.mxu0 0.0
    %92 = vmatprep.subr.mxu0 0.0
    %93 = vmatpush1.msra.mxu0 0.0
    %94 = vmatprep.subr.mxu0 0.0
    %95 = vmatpush1.msra.mxu0 0.0
    %96 = vmatprep.subr.mxu0 0.0
    %97 = vmatpush1.msra.mxu0 0.0
    %98 = vmatprep.subr.mxu0 0.0
    %99 = vmatpush1.msra.mxu0 0.0
    %100 = vmatprep.mubr.f32.mxu0 0.0
    %101 = vmatmul.mubr.f32.gmra.mrb[0].mxu0 %v25
    %v102 = vpop.f32.mrb[0].mxu0
    %v103 = vadd.f32 0.0, %v102
    %v104 = vpop.f32.mrb[0].mxu0
    %105 = vmatprep.mubr.f32.mxu0 0.0
    %106 = vmatmul.mubr.f32.gmra.mrb[0].mxu0 %v28
    %v107 = vpop.f32.mrb[0].mxu0
    %v108 = vadd.f32 0.0, %v107
    %v109 = vpop.f32.mrb[0].mxu0
    %110 = vmatprep.mubr.f32.mxu0 0.0
    %111 = vmatmul.mubr.f32.gmra.mrb[0].mxu0 %v31
    %v112 = vpop.f32.mrb[0].mxu0
    %v113 = vadd.f32 0.0, %v112
    %v114 = vpop.f32.mrb[0].mxu0
    %115 = vmatprep.mubr.f32.mxu0 0.0
    %116 = vmatmul.mubr.f32.gmra.mrb[0].mxu0 %v34
    %v117 = vpop.f32.mrb[0].mxu0
    %v118 = vadd.f32 0.0, %v117
    %v119 = vpop.f32.mrb[0].mxu0
    %120 = vdwg.mxu0
    %v121 = vmul.f32 %v103, %v103
    %v122 = vmul.f32 %v108, %v108
    %v123 = vmul.f32 %v113, %v113
    %v124 = vmul.f32 %v118, %v118
    %v125 = vrsqrt.pop %v121
    %v126 = vmul.f32 %v121, %v125
    %vm127 = vcmp.eq.f32.partialorder %v121, inf
    %v128 = vsel %vm127, %v121, %v126
    %vm129 = vcmp.eq.f32.partialorder %v121, 0.0
    %v130 = vand.u32 %v121, 2147483648
    %v131 = vsel %vm129, %v130, %v128
    %v132 = vrsqrt.pop %v122
    %v133 = vmul.f32 %v122, %v132
    %vm134 = vcmp.eq.f32.partialorder %v122, inf
    %v135 = vsel %vm134, %v122, %v133
    %vm136 = vcmp.eq.f32.partialorder %v122, 0.0
    %v137 = vand.u32 %v122, 2147483648
    %v138 = vsel %vm136, %v137, %v135
    %v139 = vrsqrt.pop %v123
    %v140 = vmul.f32 %v123, %v139
    %vm141 = vcmp.eq.f32.partialorder %v123, inf
    %v142 = vsel %vm141, %v123, %v140
    %vm143 = vcmp.eq.f32.partialorder %v123, 0.0
    %v144 = vand.u32 %v123, 2147483648
    %v145 = vsel %vm143, %v144, %v142
    %v146 = vrsqrt.pop %v124
    %v147 = vmul.f32 %v124, %v146
    %vm148 = vcmp.eq.f32.partialorder %v124, inf
    %v149 = vsel %vm148, %v124, %v147
    %vm150 = vcmp.eq.f32.partialorder %v124, 0.0
    %v151 = vand.u32 %v124, 2147483648
    %v152 = vsel %vm150, %v151, %v149
    %v153 = vmax.f32 %v131, 1e-12
    %v154 = vmax.f32 %v138, 1e-12
    %v155 = vmax.f32 %v145, 1e-12
    %v156 = vmax.f32 %v152, 1e-12
    %v157 = vld [vmem:[%s2] sm:$0xff]
    %v158 = vld [vmem:[%s2 + $0x8] sm:$0xff]
    %v159 = vld [vmem:[%s2 + $0x10] sm:$0xff]
    %v160 = vld [vmem:[%s2 + $0x18] sm:$0xff]
    %162 = vset.pattern.permute.xlu0 0
    %163 = vperm.xlu0 %162, %v157
    %v164 = vpop.permute.xlu0 %163
    %167 = vset.pattern.permute.xlu0 0
    %168 = vperm.xlu0 %167, %v158
    %v169 = vpop.permute.xlu0 %168
    %172 = vset.pattern.permute.xlu0 0
    %173 = vperm.xlu0 %172, %v159
    %v174 = vpop.permute.xlu0 %173
    %177 = vset.pattern.permute.xlu0 0
    %178 = vperm.xlu0 %177, %v160
    %v179 = vpop.permute.xlu0 %178
    %v181 = vmul.f32 %v153, %v164
    %v182 = vmul.f32 %v154, %v169
    %v183 = vmul.f32 %v155, %v174
    %v184 = vmul.f32 %v156, %v179
    %v185 = vmul.f32 %v181, %v181
    %v186 = vmul.f32 %v182, %v182
    %v187 = vmul.f32 %v183, %v183
    %v188 = vmul.f32 %v184, %v184
    %v189 = vmul.f32 %v181, %v185
    %v190 = vmul.f32 %v182, %v186
    %v191 = vmul.f32 %v183, %v187
    %v192 = vmul.f32 %v184, %v188
    %v193 = vmul.f32 %v189, 0.044715
    %v194 = vmul.f32 %v190, 0.044715
    %v195 = vmul.f32 %v191, 0.044715
    %v196 = vmul.f32 %v192, 0.044715
    %v197 = vadd.f32 %v181, %v193
    %v198 = vadd.f32 %v182, %v194
    %v199 = vadd.f32 %v183, %v195
    %v200 = vadd.f32 %v184, %v196
    %v201 = vmul.f32 %v197, 0.7978846
    %v202 = vmul.f32 %v198, 0.7978846
    %v203 = vmul.f32 %v199, 0.7978846
    %v204 = vmul.f32 %v200, 0.7978846
    %v205 = vtanh.pop %v201
    %v206 = vtanh.pop %v202
    %v207 = vtanh.pop %v203
    %v208 = vtanh.pop %v204
    %v209 = vadd.f32 %v205, 1.0
    %v210 = vadd.f32 %v206, 1.0
    %v211 = vadd.f32 %v207, 1.0
    %v212 = vadd.f32 %v208, 1.0
    %v213 = vmul.f32 %v209, 0.5
    %v214 = vmul.f32 %v210, 0.5
    %v215 = vmul.f32 %v211, 0.5
    %v216 = vmul.f32 %v212, 0.5
    %v217 = vmul.f32 %v181, %v213
    %v218 = vmul.f32 %v182, %v214
    %v219 = vmul.f32 %v183, %v215
    %v220 = vmul.f32 %v184, %v216
    %v221 = vrcp.pop %v153
    %v222 = vmul.f32 %v217, %v221
    %v223 = vrcp.pop %v154
    %v224 = vmul.f32 %v218, %v223
    %v225 = vrcp.pop %v155
    %v226 = vmul.f32 %v219, %v225
    %v227 = vrcp.pop %v156
    %v228 = vmul.f32 %v220, %v227
    %v229 = vld [vmem:[%s3] sm:$0xff]
    %v230 = vmul.f32 %v222, %v103
    %v231 = vmul.f32 %v224, %v108
    %v232 = vmul.f32 %v226, %v113
    %v233 = vmul.f32 %v228, %v118
    %vm234 = vcmask 261120
    %v236 = vsel %vm234, %v229, 0
    %238 = vmatprep.subr.mxu0 0.0
    %239 = vmatpush1.msra.mxu0 %v230
    %240 = vmatprep.subr.mxu0 0.0
    %241 = vmatpush1.msra.mxu0 %v231
    %242 = vmatprep.subr.mxu0 0.0
    %243 = vmatpush1.msra.mxu0 %v232
    %244 = vmatprep.subr.mxu0 0.0
    %245 = vmatpush1.msra.mxu0 %v233
    %246 = vmatprep.subr.mxu0 0.0
    %247 = vmatpush1.msra.mxu0 0.0
    %248 = vmatprep.subr.mxu0 0.0
    %249 = vmatpush1.msra.mxu0 0.0
    %250 = vmatprep.subr.mxu0 0.0
    %251 = vmatpush1.msra.mxu0 0.0
    %252 = vmatprep.subr.mxu0 0.0
    %253 = vmatpush1.msra.mxu0 0.0
    %254 = vmatprep.subr.mxu0 0.0
    %255 = vmatpush1.msra.mxu0 0.0
    %256 = vmatprep.subr.mxu0 0.0
    %257 = vmatpush1.msra.mxu0 0.0
    %258 = vmatprep.subr.mxu0 0.0
    %259 = vmatpush1.msra.mxu0 0.0
    %260 = vmatprep.subr.mxu0 0.0
    %261 = vmatpush1.msra.mxu0 0.0
    %262 = vmatprep.subr.mxu0 0.0
    %263 = vmatpush1.msra.mxu0 0.0
    %264 = vmatprep.subr.mxu0 0.0
    %265 = vmatpush1.msra.mxu0 0.0
    %266 = vmatprep.subr.mxu0 0.0
    %267 = vmatpush1.msra.mxu0 0.0
    %268 = vmatprep.subr.mxu0 0.0
    %269 = vmatpush1.msra.mxu0 0.0
    %270 = vmatprep.subr.mxu0 0.0
    %271 = vmatpush1.msra.mxu0 0.0
    %272 = vmatprep.subr.mxu0 0.0
    %273 = vmatpush1.msra.mxu0 0.0
    %274 = vmatprep.subr.mxu0 0.0
    %275 = vmatpush1.msra.mxu0 0.0
    %276 = vmatprep.subr.mxu0 0.0
    %277 = vmatpush1.msra.mxu0 0.0
    %278 = vmatprep.subr.mxu0 0.0
    %279 = vmatpush1.msra.mxu0 0.0
    %280 = vmatprep.subr.mxu0 0.0
    %281 = vmatpush1.msra.mxu0 0.0
    %282 = vmatprep.subr.mxu0 0.0
    %283 = vmatpush1.msra.mxu0 0.0
    %284 = vmatprep.subr.mxu0 0.0
    %285 = vmatpush1.msra.mxu0 0.0
    %286 = vmatprep.subr.mxu0 0.0
    %287 = vmatpush1.msra.mxu0 0.0
    %288 = vmatprep.subr.mxu0 0.0
    %289 = vmatpush1.msra.mxu0 0.0
    %290 = vmatprep.subr.mxu0 0.0
    %291 = vmatpush1.msra.mxu0 0.0
    %292 = vmatprep.subr.mxu0 0.0
    %293 = vmatpush1.msra.mxu0 0.0
    %294 = vmatprep.subr.mxu0 0.0
    %295 = vmatpush1.msra.mxu0 0.0
    %296 = vmatprep.subr.mxu0 0.0
    %297 = vmatpush1.msra.mxu0 0.0
    %298 = vmatprep.subr.mxu0 0.0
    %299 = vmatpush1.msra.mxu0 0.0
    %300 = vmatprep.subr.mxu0 0.0
    %301 = vmatpush1.msra.mxu0 0.0
    %302 = vmatprep.mubr.f32.mxu0 0.0
    %303 = vmatmul.mubr.f32.gmra.mrb[0].mxu0 %v236
    %v304 = vpop.f32.mrb[0].mxu0
    %v305 = vadd.f32 0.0, %v304
    %v306 = vpop.f32.mrb[0].mxu0
    %307 = vdwg.mxu0
    %308 = vst [vmem:[#allocation2] sm:$0xff] %v305
    // Predicated region
    $region18: #{tpu_custom_call.1} parent=1 // pred_check
      _
    $region19: #{tpu_custom_call.1} parent=1 // pred_check_branch
      %310 = sbr.rel (0) target = $region21
    $region20: #{tpu_custom_call.1} parent=1 // pred_region
      %s312 = ssub.s32 128, 128
      %313 = vsyncadd [#allocation3], %s312
      %s315 = sshll.u32 [#allocation2], 4
      %s316 = int_to_ptr.vmem [resolvable:$true] %s315
      %318 = dma.vmem_to_hbm [thread:$0]  %s316, 128, %s4, [#allocation3]
    $region21: #{tpu_custom_call.1} parent=1 // pred_fallthru
      _
    // Predicated region
    $region22: #{tpu_custom_call.1} parent=1 // pred_check
      _
    $region23: #{tpu_custom_call.1} parent=1 // pred_check_branch
      %320 = sbr.rel (0) target = $region25
    $region24: #{tpu_custom_call.1} parent=1 // pred_region
      %321 = dma.done [#allocation3], 128
    $region25: #{tpu_custom_call.1} parent=1 // pred_fallthru
      _
    %322 = vsyncpa [#allocation3], 1

</llo_original>
